<compile_context>
chip_gen: v5e
topology: v5e:2x2
jax: 0.10.0
libtpu: 0.0.40
codegen_flags: <defaults>
</compile_context>

<pallas_src>
import numpy as np
import jax
import jax.numpy as jnp
from jax.experimental import pallas as pl
from jax.experimental.pallas import tpu as pltpu

ALPHA_CUT = 0.1  # module default kwargs.get('alpha_cut', 0.1)


def _make_fuzzify_kernel(alpha_cut):
    alpha_cut = float(alpha_cut)

    def _fuzzify_kernel(x_ref, p_ref, o_ref):
        """One grid step = one batch element x one S-tile (lane-dense output).

        x_ref : (1, V, tS)    input samples (S on the lane axis)
        p_ref : (2, V, P)     p_ref[0] = centers, p_ref[1] = gamma = -0.5/sd^2
        o_ref : (1, V, P, tS) membership values (alpha-cut applied), S on lanes
        """
        x = x_ref[0]                                  # (V, tS)
        c = p_ref[0]                                  # (V, P)
        g = p_ref[1]                                  # (V, P)

        diff = x[:, None, :] - c[:, :, None]          # (V, P, tS)
        mv = jnp.exp(diff * diff * g[:, :, None])     # gaussmf, divide hoisted
        o_ref[0] = jnp.where(mv >= alpha_cut, mv, jnp.zeros_like(mv))

    return _fuzzify_kernel


def _choose_s_tile(S, V, P, max_out_tile_bytes=4 << 20):
    """Largest S-tile keeping the output tile <= ~4 MiB.

    Must be the full S or a 128-multiple dividing S (Pallas (8,128) rule).
    """
    if S % 128 != 0:
        return S                       # full-extent last dim is always legal
    max_ts = max_out_tile_bytes // (V * P * 4)
    max_ts = min(S, (max_ts // 128) * 128)
    if max_ts < 128:
        return 128                     # S is a 128-multiple, so 128 divides S
    ts = max_ts
    while S % ts != 0:                 # terminates at worst at 128
        ts -= 128
    return ts


def grid_partitioner_forward(x, centers, sds, alpha_cut=ALPHA_CUT,
                             transpose_output=True):
    """x: (B, V, S) f32 ; centers/sds: (V, P) f32 -> (B, V, S, P) f32.

    Internally computes a lane-dense (B, V, P, S) array; set
    transpose_output=False to get it directly (saves one full HBM pass).
    """
    B, V, S = x.shape
    P = centers.shape[1]
    tS = _choose_s_tile(S, V, P)
    n_s = S // tS

    # Hoisted scale; guard sd == 0 (never-fit variable) to avoid 1/0.
    sd_safe = jnp.where(sds > 0, sds, jnp.float32(1e-6))
    gamma = (-0.5 / (sd_safe * sd_safe)).astype(jnp.float32)
    params = jnp.stack([centers.astype(jnp.float32), gamma], axis=0)  # (2, V, P)

    out_bvps = pl.pallas_call(
        _make_fuzzify_kernel(alpha_cut),
        out_shape=jax.ShapeDtypeStruct((B, V, P, S), jnp.float32),
        grid_spec=pltpu.PrefetchScalarGridSpec(
            num_scalar_prefetch=0,
            grid=(B, n_s),
            in_specs=[
                pl.BlockSpec((1, V, tS), lambda b, s: (b, 0, s)),
                pl.BlockSpec((2, V, P), lambda b, s: (0, 0, 0)),
            ],
            out_specs=pl.BlockSpec((1, V, P, tS), lambda b, s: (b, 0, 0, s)),
        ),
        compiler_params=pltpu.CompilerParams(
            dimension_semantics=("parallel", "parallel"),
            vmem_limit_bytes=32 * 1024 * 1024,
        ),
    )(x, params)

    if transpose_output:
        # Match the PyTorch forward layout (B, V, S, P).
        return jnp.transpose(out_bvps, (0, 1, 3, 2))
    return out_bvps


def fit_gauss_fuzzy_sets(x_np, npart):
    """Mirror GridPartitioner.fit for gaussmf (deterministic, plain numpy).

    Returns centers (V, P) and sds (V, P).
    """
    _, V, _ = x_np.shape
    centers = np.zeros((V, npart), dtype=np.float32)
    sds = np.zeros((V, npart), dtype=np.float32)
    upper_bounds = np.zeros((V,), dtype=np.float64)
    lower_bounds = np.zeros((V,), dtype=np.float64)
    for v in range(V):
        changed = False
        _max = float(x_np[:, v, :].max())
        if _max > upper_bounds[v]:
            upper_bounds[v] = _max * 1.2 if _max > 0 else _max * 0.8
            changed = True
        _max = upper_bounds[v]
        _min = float(x_np[:, v, :].min())
        if _min < lower_bounds[v]:
            lower_bounds[v] = _min * 0.8 if _min > 0 else _min * 1.2
            changed = True
        _min = lower_bounds[v]
        if changed:
            cs = np.linspace(_min, _max, npart)
            partlen = abs(cs[1] - cs[0])
            centers[v, :] = cs.astype(np.float32)
            sds[v, :] = np.float32(partlen / 3.0)
    return centers, sds


def reference_forward(x, centers, sds, alpha_cut=ALPHA_CUT):
    """Pure-JAX reference (mode='full', gaussmf + alpha-cut), (B, V, S, P)."""
    xb = x[:, :, :, None]           # (B, V, S, 1)
    cb = centers[None, :, None, :]  # (1, V, 1, P)
    sdb = sds[None, :, None, :]
    mv = jnp.exp(-((xb - cb) ** 2) / (2.0 * sdb ** 2))
    return jnp.where(mv >= alpha_cut, mv, 0.0)


if __name__ == "__main__":
    # Small shapes consistent with the module's forward: (batch, vars, samples).
    # S is a 128-multiple so the lane-dense output path is exercised.
    B, V, S, P = 2, 4, 256, 8

    key = jax.random.PRNGKey(0)
    x = jax.random.normal(key, (B, V, S), dtype=jnp.float32)

    # Deterministic "fit" (replaces GridPartitioner.fit / checkpoint load).
    centers_np, sds_np = fit_gauss_fuzzy_sets(np.asarray(x), P)
    centers = jnp.asarray(centers_np, dtype=jnp.float32)
    sds = jnp.asarray(sds_np, dtype=jnp.float32)

    # TODO(synk): 'top-k' / 'indexes' fuzzy modes (torch.topk over partitions)
    # are not implemented in the kernel; only the default mode='full' path is.

    out = grid_partitioner_forward(x, centers, sds)
    out = jax.block_until_ready(out)

    ref = reference_forward(x, centers, sds)
    np.testing.assert_allclose(np.asarray(out), np.asarray(ref),
                               rtol=1e-5, atol=1e-6)
    assert out.shape == (B, V, S, P) and out.dtype == jnp.float32

    # Lane-dense (transpose-free) path also matches.
    out_dense = jax.block_until_ready(
        grid_partitioner_forward(x, centers, sds, transpose_output=False))
    np.testing.assert_allclose(
        np.asarray(out_dense), np.asarray(jnp.transpose(ref, (0, 1, 3, 2))),
        rtol=1e-5, atol=1e-6)

    print("KERNEL_OK")
</pallas_src>

<mosaic_0001>
module attributes {stable_mosaic.version = 11 : i64} {
  func.func @_fuzzify_kernel(%arg0: i32, %arg1: i32, %arg2: memref<1x4x256xf32, #tpu.memory_space<vmem>>, %arg3: memref<2x4x8xf32, #tpu.memory_space<vmem>>, %arg4: memref<1x4x8x256xf32, #tpu.memory_space<vmem>>) attributes {dimension_semantics = [#tpu.dimension_semantics<parallel>, #tpu.dimension_semantics<parallel>], iteration_bounds = array<i64: 2, 1>, scalar_prefetch = 0 : i64, scratch_operands = 0 : i64, tpu.core_type = #tpu.core_type<tc>, window_params = [{transform_indices = @transform_0, window_bounds = array<i64: 1, 4, 256>}, {pipeline_mode = #tpu.pipeline_mode<synchronous>, transform_indices = @transform_1, window_bounds = array<i64: 2, 4, 8>}, {transform_indices = @transform_2, window_bounds = array<i64: 1, 4, 8, 256>}]} {
    %c0 = arith.constant 0 : index
    %c0_0 = arith.constant 0 : index
    %c0_1 = arith.constant 0 : index
    %0 = vector.load %arg2[%c0, %c0_0, %c0_1] : memref<1x4x256xf32, #tpu.memory_space<vmem>>, vector<1x4x256xf32>
    %1 = vector.shape_cast %0 : vector<1x4x256xf32> to vector<4x256xf32>
    %c0_2 = arith.constant 0 : index
    %c0_3 = arith.constant 0 : index
    %c0_4 = arith.constant 0 : index
    %2 = vector.load %arg3[%c0_2, %c0_3, %c0_4] : memref<2x4x8xf32, #tpu.memory_space<vmem>>, vector<1x4x8xf32>
    %3 = vector.shape_cast %2 : vector<1x4x8xf32> to vector<4x8xf32>
    %c1 = arith.constant 1 : index
    %c0_5 = arith.constant 0 : index
    %c0_6 = arith.constant 0 : index
    %4 = vector.load %arg3[%c1, %c0_5, %c0_6] : memref<2x4x8xf32, #tpu.memory_space<vmem>>, vector<1x4x8xf32>
    %5 = vector.shape_cast %4 : vector<1x4x8xf32> to vector<4x8xf32>
    %6 = vector.shape_cast %1 : vector<4x256xf32> to vector<4x1x256xf32>
    %7 = vector.shape_cast %3 : vector<4x8xf32> to vector<4x8x1xf32>
    %8 = vector.broadcast %6 : vector<4x1x256xf32> to vector<4x8x256xf32>
    %9 = vector.broadcast %7 : vector<4x8x1xf32> to vector<4x8x256xf32>
    %10 = arith.subf %8, %9 : vector<4x8x256xf32>
    %11 = arith.mulf %10, %10 : vector<4x8x256xf32>
    %12 = vector.shape_cast %5 : vector<4x8xf32> to vector<4x8x1xf32>
    %13 = vector.broadcast %12 : vector<4x8x1xf32> to vector<4x8x256xf32>
    %14 = arith.mulf %11, %13 : vector<4x8x256xf32>
    %15 = math.exp %14 : vector<4x8x256xf32>
    %cst = arith.constant 1.000000e-01 : f32
    %16 = vector.broadcast %cst : f32 to vector<4x8x256xf32>
    %17 = arith.cmpf oge, %15, %16 : vector<4x8x256xf32>
    %cst_7 = arith.constant 0.000000e+00 : f32
    %18 = vector.broadcast %cst_7 : f32 to vector<4x8x256xf32>
    %19 = arith.select %17, %15, %18 : vector<4x8x256xi1>, vector<4x8x256xf32>
    %c0_8 = arith.constant 0 : index
    %c0_9 = arith.constant 0 : index
    %c0_10 = arith.constant 0 : index
    %c0_11 = arith.constant 0 : index
    %20 = vector.load %arg4[%c0_8, %c0_9, %c0_10, %c0_11] : memref<1x4x8x256xf32, #tpu.memory_space<vmem>>, vector<1x4x8x256xf32>
    %21 = vector.shape_cast %20 : vector<1x4x8x256xf32> to vector<4x8x256xf32>
    %22 = vector.shape_cast %19 : vector<4x8x256xf32> to vector<1x4x8x256xf32>
    tpu.vector_store %arg4[%c0_8, %c0_9, %c0_10, %c0_11], %22 {strides = array<i32>} : memref<1x4x8x256xf32, #tpu.memory_space<vmem>>, vector<1x4x8x256xf32>,
    return
  }
  func.func @transform_0(%arg0: i32, %arg1: i32) -> (i32, i32, i32) {
    %c0_i32 = arith.constant 0 : i32
    %c0_i32_0 = arith.constant 0 : i32
    return %arg0, %c0_i32, %arg1 : i32, i32, i32
  }
  func.func @transform_1(%arg0: i32, %arg1: i32) -> (i32, i32, i32) {
    %c0_i32 = arith.constant 0 : i32
    %c0_i32_0 = arith.constant 0 : i32
    %c0_i32_1 = arith.constant 0 : i32
    %c0_i32_2 = arith.constant 0 : i32
    return %c0_i32, %c0_i32_0, %c0_i32_1 : i32, i32, i32
  }
  func.func @transform_2(%arg0: i32, %arg1: i32) -> (i32, i32, i32, i32) {
    %c0_i32 = arith.constant 0 : i32
    %c0_i32_0 = arith.constant 0 : i32
    %c0_i32_1 = arith.constant 0 : i32
    return %arg0, %c0_i32, %c0_i32_0, %arg1 : i32, i32, i32, i32
  }
}

</mosaic_0001>

<llo_original>
// kernel: tpu_custom_call.1
$region0: #{tpu_custom_call.1}
  #allocation0 [shape = 'u32[]', space=smem, size = 0x4, offset = 0x4, fixed_abs, tag = 'smem constant byte address 0x4 - core index']
  #allocation1 [shape = 'u32[72,128]{1,0:T(1,128)}', space=vmem, size = 0x9000, scoped, tag = 'internal scratch']
  %s0 = inlined_call_operand.hbm [shape: f32[2,4,256], index: 0, kind: input, shape index: {}]
  %s1 = inlined_call_operand.hbm [shape: f32[2,4,8], index: 1, kind: input, shape index: {}]
  %s2 = inlined_call_operand.hbm [shape: f32[2,4,8,256], index: 2, kind: output, shape index: {}]
  %s3 = sld [smem:[#allocation0]]
  $region49: #{tpu_custom_call.1} parent=0
    _
  %s5 = ssub.s32 1, %s3
  %s6 = scalar_select 0, %s5, %s3
  $region1: #{tpu_custom_call.1} parent=0
    #allocation2 [shape = 'u8[8192]{0}', space=vmem, size = 0x2000, scoped, tag = 'input window, operand 0']
    #allocation3 [shape = 's32[2]{0}', space=sflag, size = 0x8, scoped, tag = 'scoped memory for tpu_custom_call.1']
    #allocation4 [shape = 's32[2]{0}', space=sflag, size = 0x8, scoped, tag = 'scoped memory for tpu_custom_call.1']
    #allocation5 [shape = 'u8[4096]{0}', space=vmem, size = 0x1000, scoped, tag = 'input window, operand 1, single buffered']
    #allocation6 [shape = 's32[1]{0}', space=sflag, size = 0x4, scoped, tag = 'scoped memory for tpu_custom_call.1']
    #allocation7 [shape = 'u8[65536]{0}', space=vmem, size = 0x10000, scoped, tag = 'output window, operand 0']
    %7 = vsyncpa [#allocation3], 0
    %s8 = scalar_lea.sflag [#allocation3], 1
    %9 = vsyncpa %s8, 0
    %10 = vsyncpa [#allocation6], 0
    %11 = vsyncpa [#allocation4], 0
    %s12 = scalar_lea.sflag [#allocation4], 1
    %13 = vsyncpa %s12, 0
    loop: start=0, step=1, limit=4
    $region2: #{tpu_custom_call.1} parent=1 // loop_pre_header
      _
    $region3: #{tpu_custom_call.1} parent=1 // loop_header
      %s15 = sphi 0, %s19
      %p16 = scmp.ge.s32.totalorder %s15, 4
      %s22 = sphi 0, %s34
      %s23 = sphi 0, %s30
      %s24 = sphi 0, %s22
      %s25 = sphi 0, %s23
      %s26 = sphi 0, %s24
      %s27 = sphi 0, %s25
      %s39 = sphi 0, %s41
      %s42 = sphi 0, %s39
      %s43 = sphi 0, %s42
      %s59 = sphi 0, %s43
      %s63 = sphi 0, %s63
      %s65 = sphi 0, %s63
      %s66 = sphi 0, %s65
      %s80 = sphi 0, %s66
      %s88 = sphi 0, %s90
      %s91 = sphi 0, %s88
      %s92 = sphi 0, %s91
      %s108 = sphi 0, %s92
    $region4: #{tpu_custom_call.1} parent=1 // loop_header_branch
      %18 = sbr.rel (%p16) target = $region8
    $region5: #{tpu_custom_call.1} parent=1 // loop_body
      %s20 = ssub.s32 %s15, 1
      %s21 = ssub.s32 %s15, 2
      %s28 = sadd.s32 1, %s23
      %p29 = scmp.ge.s32.totalorder %s28, 1
      %s30 = scalar_select %p29, 0, %s28
      %s31 = sadd.s32 1, %s22
      %s32 = scalar_select %p29, %s31, %s22
      %p33 = scmp.ge.s32.totalorder %s32, 2
      %s34 = scalar_select %p33, 0, %s32
      %s35 = ssub.s32 %s22, %s34
      %s36 = ssub.s32 %s23, %s30
      %s37 = sor.u32 %s35, %s36
      %p38 = scmp.eq.s32.totalorder %s37, 0
      %s40 = sadd.s32 %s39, 1
      %s41 = scalar_select %p38, %s39, %s40
      %p44 = pneg %p38
      %p45 = scmp.eq.s32.totalorder %s15, 1
      %p46 = por %p44, %p45
      %p47 = scmp.ne.s32.totalorder %s39, %s42
      %p48 = scmp.eq.s32.totalorder %s15, 0
      %p49 = por %p47, %p48
      %p50 = scmp.ne.s32.totalorder %s39, %s42
      %p51 = scmp.eq.s32.totalorder %s20, 1
      %p52 = por %p50, %p51
      %p53 = scmp.ne.s32.totalorder %s42, %s43
      %p54 = scmp.eq.s32.totalorder %s20, 0
      %p55 = por %p53, %p54
      %p56 = scmp.ne.s32.totalorder %s42, %s43
      %p57 = scmp.eq.s32.totalorder %s21, 1
      %p58 = por %p56, %p57
      %p60 = scmp.ne.s32.totalorder %s43, %s59
      %p61 = scmp.eq.s32.totalorder %s21, 0
      %p62 = por %p60, %p61
      %s64 = sadd.s32 %s63, 1
      %p67 = scmp.eq.s32.totalorder %s15, 1
      %p68 = scmp.ne.s32.totalorder %s63, %s65
      %p69 = scmp.eq.s32.totalorder %s15, 0
      %p70 = por %p68, %p69
      %p71 = scmp.ne.s32.totalorder %s63, %s65
      %p72 = scmp.eq.s32.totalorder %s20, 1
      %p73 = por %p71, %p72
      %p74 = scmp.ne.s32.totalorder %s65, %s66
      %p75 = scmp.eq.s32.totalorder %s20, 0
      %p76 = por %p74, %p75
      %p77 = scmp.ne.s32.totalorder %s65, %s66
      %p78 = scmp.eq.s32.totalorder %s21, 1
      %p79 = por %p77, %p78
      %p81 = scmp.ne.s32.totalorder %s66, %s80
      %p82 = scmp.eq.s32.totalorder %s21, 0
      %p83 = por %p81, %p82
      %s84 = ssub.s32 %s22, %s34
      %s85 = ssub.s32 %s23, %s30
      %s86 = sor.u32 %s84, %s85
      %p87 = scmp.eq.s32.totalorder %s86, 0
      %s89 = sadd.s32 %s88, 1
      %s90 = scalar_select %p87, %s88, %s89
      %p93 = pneg %p87
      %p94 = scmp.eq.s32.totalorder %s15, 1
      %p95 = por %p93, %p94
      %p96 = scmp.ne.s32.totalorder %s88, %s91
      %p97 = scmp.eq.s32.totalorder %s15, 0
      %p98 = por %p96, %p97
      %p99 = scmp.ne.s32.totalorder %s88, %s91
      %p100 = scmp.eq.s32.totalorder %s20, 1
      %p101 = por %p99, %p100
      %p102 = scmp.ne.s32.totalorder %s91, %s92
      %p103 = scmp.eq.s32.totalorder %s20, 0
      %p104 = por %p102, %p103
      %p105 = scmp.ne.s32.totalorder %s91, %s92
      %p106 = scmp.eq.s32.totalorder %s21, 1
      %p107 = por %p105, %p106
      %p109 = scmp.ne.s32.totalorder %s92, %s108
      %p110 = scmp.eq.s32.totalorder %s21, 0
      %p111 = por %p109, %p110
      %p112 = scmp.le.s32.totalorder 1, %s15
      %p113 = scmp.lt.s32.totalorder %s15, 3
      %p114 = pnand %p112, %p113
      %p115 = pneg %p114
      // Predicated region
      $region9: #{tpu_custom_call.1} parent=5 // pred_check
        _
      $region10: #{tpu_custom_call.1} parent=5 // pred_check_branch
        %117 = sbr.rel (%p114) target = $region12
      $region11: #{tpu_custom_call.1} parent=5 // pred_region
        %s118 = ssub.s32 %s15, 1
        // Predicated region
        $region13: #{tpu_custom_call.1} parent=11 // pred_check
          %p119 = pneg %p76
        $region14: #{tpu_custom_call.1} parent=11 // pred_check_branch
          %121 = sbr.rel (%p119) target = $region16
        $region15: #{tpu_custom_call.1} parent=11 // pred_region
          %123 = vsyncadd [#allocation6], 0
          %s124 = sshll.u32 %s1, 4
          %s125 = int_to_ptr.hbm [resolvable:$true] %s124
          %s126 = sshll.u32 [#allocation5], 4
          %s127 = int_to_ptr.vmem [resolvable:$true] %s126
          %132 = dma.hbm_to_vmem [thread:$0]  %s125, 128, %s127, [#allocation6], 64, 64, 4
        $region16: #{tpu_custom_call.1} parent=11 // pred_fallthru
          _
      $region12: #{tpu_custom_call.1} parent=5 // pred_fallthru
        _
      %p133 = scmp.lt.s32.totalorder %s15, 2
      // Predicated region
      $region17: #{tpu_custom_call.1} parent=5 // pred_check
        %p134 = pneg %p133
      $region18: #{tpu_custom_call.1} parent=5 // pred_check_branch
        %136 = sbr.rel (%p134) target = $region20
      $region19: #{tpu_custom_call.1} parent=5 // pred_region
        // Predicated region
        $region21: #{tpu_custom_call.1} parent=19 // pred_check
          %p137 = pneg %p49
        $region22: #{tpu_custom_call.1} parent=19 // pred_check_branch
          %139 = sbr.rel (%p137) target = $region24
        $region23: #{tpu_custom_call.1} parent=19 // pred_region
          %s140 = sand.u32 %s39, 1
          %s141 = scalar_lea.sflag [#allocation3], %s140
          %s142 = sand.u32 %s39, 1
          %s143 = smul.addr %s142, 8
          %s144 = scalar_lea.vmem [#allocation2], %s143
          %s145 = smul.u32 2, %s23
          %147 = vsyncadd %s141, 0
          %s148 = smul.addr %s22, 2
          %s149 = sadd.s32 %s145, %s148
          %s150 = smul.addr %s149, 4
          %s151 = scalar_lea.hbm %s0, %s150
          %s153 = sshll.u32 %s151, 4
          %s154 = int_to_ptr.hbm [resolvable:$true] %s153
          %s155 = sshll.u32 %s144, 4
          %s156 = int_to_ptr.vmem [resolvable:$true] %s155
          %158 = dma.hbm_to_vmem [thread:$0]  %s154, 128, %s156, %s141
        $region24: #{tpu_custom_call.1} parent=19 // pred_fallthru
          _
      $region20: #{tpu_custom_call.1} parent=5 // pred_fallthru
        _
      %p159 = scmp.le.s32.totalorder 1, %s15
      %p160 = scmp.lt.s32.totalorder %s15, 3
      %p161 = pnand %p159, %p160
      %p162 = pneg %p161
      // Predicated region
      $region25: #{tpu_custom_call.1} parent=5 // pred_check
        _
      $region26: #{tpu_custom_call.1} parent=5 // pred_check_branch
        %164 = sbr.rel (%p161) target = $region28
      $region27: #{tpu_custom_call.1} parent=5 // pred_region
        %s165 = ssub.s32 %s15, 1
        %s166 = sand.u32 %s42, 1
        %s167 = scalar_lea.sflag [#allocation3], %s166
        %s168 = sand.u32 %s42, 1
        %s169 = smul.addr %s168, 8
        %s170 = scalar_lea.vmem [#allocation2], %s169
        // Predicated region
        $region29: #{tpu_custom_call.1} parent=27 // pred_check
          %p171 = pneg %p55
        $region30: #{tpu_custom_call.1} parent=27 // pred_check_branch
          %173 = sbr.rel (%p171) target = $region32
        $region31: #{tpu_custom_call.1} parent=27 // pred_region
          %175 = dma.done %s167, 128
        $region32: #{tpu_custom_call.1} parent=27 // pred_fallthru
          _
        // Predicated region
        $region33: #{tpu_custom_call.1} parent=27 // pred_check
          %p176 = pneg %p76
        $region34: #{tpu_custom_call.1} parent=27 // pred_check_branch
          %178 = sbr.rel (%p176) target = $region36
        $region35: #{tpu_custom_call.1} parent=27 // pred_region
          %180 = dma.done [#allocation6], 128
        $region36: #{tpu_custom_call.1} parent=27 // pred_fallthru
          _
        %s181 = sand.u32 %s42, 1
        %s182 = scalar_lea.sflag [#allocation3], %s181
        %s183 = sand.u32 %s42, 1
        %s184 = smul.addr %s183, 8
        %s185 = scalar_lea.vmem [#allocation2], %s184
        %p186 = pneg %p55
        %p187 = pneg %p52
        %p188 = pneg %p76
        %p189 = pneg %p73
        %p190 = pneg %p104
        %p191 = pneg %p101
        %s192 = sand.u32 %s91, 1
        %s193 = scalar_lea.sflag [#allocation4], %s192
        %s194 = sand.u32 %s91, 1
        %s195 = smul.addr %s194, 64
        %s196 = scalar_lea.vmem [#allocation7], %s195
        %s197 = smul.u32 2, %s25
        %s198 = smul.u32 2, %s25
        %v199 = vld [vmem:[%s170] sm:$0xff]
        %v200 = vld [vmem:[#allocation5] sm:$0xf]
        %s201 = scalar_lea.vmem [#allocation5], 4
        %v202 = vld [vmem:[%s201] sm:$0xf]
        %v204 = vrot.slane %v199, 3
        %vm205 = vcmask 1040384
        %v206 = vsel %vm205, %v199, %v204
        %vm207 = vcmask 1041409
        %v208 = vsel %vm207, %v199, %v204
        %v209 = vrot.slane %v208, 1
        %vm210 = vcmask 1042434
        %v211 = vsel %vm210, %v199, %v204
        %v212 = vrot.slane %v211, 2
        %vm213 = vcmask 1043459
        %v214 = vsel %vm213, %v199, %v204
        %v215 = vrot.slane %v214, 3
        %v216 = vperm.slane %v200, 0
        %v217 = vlaneseq
        %v218 = vshrl.u32 %v217, 7
        %220 = vset.pattern.permute.xlu0 %v218
        %221 = vperm.xlu0 %220, %v216
        %v222 = vpop.permute.xlu0 %221
        %v223 = vperm.slane %v200, 1
        %v224 = vlaneseq
        %v225 = vshrl.u32 %v224, 7
        %227 = vset.pattern.permute.xlu0 %v225
        %228 = vperm.xlu0 %227, %v223
        %v229 = vpop.permute.xlu0 %228
        %v230 = vperm.slane %v200, 2
        %v231 = vlaneseq
        %v232 = vshrl.u32 %v231, 7
        %234 = vset.pattern.permute.xlu0 %v232
        %235 = vperm.xlu0 %234, %v230
        %v236 = vpop.permute.xlu0 %235
        %v237 = vperm.slane %v200, 3
        %v238 = vlaneseq
        %v239 = vshrl.u32 %v238, 7
        %241 = vset.pattern.permute.xlu0 %v239
        %242 = vperm.xlu0 %241, %v237
        %v243 = vpop.permute.xlu0 %242
        %v244 = vperm.slane %v206, 0
        %v245 = vperm.slane %v206, 1
        %v246 = vperm.slane %v209, 0
        %v247 = vperm.slane %v209, 1
        %v248 = vperm.slane %v212, 0
        %v249 = vperm.slane %v212, 1
        %v250 = vperm.slane %v215, 0
        %v251 = vperm.slane %v215, 1
        %v260 = vsub.f32 %v244, %v222
        %v261 = vsub.f32 %v245, %v222
        %v262 = vsub.f32 %v246, %v229
        %v263 = vsub.f32 %v247, %v229
        %v264 = vsub.f32 %v248, %v236
        %v265 = vsub.f32 %v249, %v236
        %v266 = vsub.f32 %v250, %v243
        %v267 = vsub.f32 %v251, %v243
        %v268 = vmul.f32 %v260, %v260
        %v269 = vmul.f32 %v261, %v261
        %v270 = vmul.f32 %v262, %v262
        %v271 = vmul.f32 %v263, %v263
        %v272 = vmul.f32 %v264, %v264
        %v273 = vmul.f32 %v265, %v265
        %v274 = vmul.f32 %v266, %v266
        %v275 = vmul.f32 %v267, %v267
        %v276 = vperm.slane %v202, 0
        %v277 = vlaneseq
        %v278 = vshrl.u32 %v277, 7
        %280 = vset.pattern.permute.xlu0 %v278
        %281 = vperm.xlu0 %280, %v276
        %v282 = vpop.permute.xlu0 %281
        %v283 = vperm.slane %v202, 1
        %v284 = vlaneseq
        %v285 = vshrl.u32 %v284, 7
        %287 = vset.pattern.permute.xlu0 %v285
        %288 = vperm.xlu0 %287, %v283
        %v289 = vpop.permute.xlu0 %288
        %v290 = vperm.slane %v202, 2
        %v291 = vlaneseq
        %v292 = vshrl.u32 %v291, 7
        %294 = vset.pattern.permute.xlu0 %v292
        %295 = vperm.xlu0 %294, %v290
        %v296 = vpop.permute.xlu0 %295
        %v297 = vperm.slane %v202, 3
        %v298 = vlaneseq
        %v299 = vshrl.u32 %v298, 7
        %301 = vset.pattern.permute.xlu0 %v299
        %302 = vperm.xlu0 %301, %v297
        %v303 = vpop.permute.xlu0 %302
        %v304 = vmul.f32 %v268, %v282
        %v305 = vmul.f32 %v269, %v282
        %v306 = vmul.f32 %v270, %v289
        %v307 = vmul.f32 %v271, %v289
        %v308 = vmul.f32 %v272, %v296
        %v309 = vmul.f32 %v273, %v296
        %v310 = vmul.f32 %v274, %v303
        %v311 = vmul.f32 %v275, %v303
        %v312 = vmul.f32 %v304, 1.442695
        %v313 = vpow.pop %v312
        %v314 = vmul.f32 %v305, 1.442695
        %v315 = vpow.pop %v314
        %v316 = vmul.f32 %v306, 1.442695
        %v317 = vpow.pop %v316
        %v318 = vmul.f32 %v307, 1.442695
        %v319 = vpow.pop %v318
        %v320 = vmul.f32 %v308, 1.442695
        %v321 = vpow.pop %v320
        %v322 = vmul.f32 %v309, 1.442695
        %v323 = vpow.pop %v322
        %v324 = vmul.f32 %v310, 1.442695
        %v325 = vpow.pop %v324
        %v326 = vmul.f32 %v311, 1.442695
        %v327 = vpow.pop %v326
        %vm328 = vcmp.ge.f32.partialorder %v313, 0.1
        %vm329 = vcmp.ge.f32.partialorder %v315, 0.1
        %vm330 = vcmp.ge.f32.partialorder %v317, 0.1
        %vm331 = vcmp.ge.f32.partialorder %v319, 0.1
        %vm332 = vcmp.ge.f32.partialorder %v321, 0.1
        %vm333 = vcmp.ge.f32.partialorder %v323, 0.1
        %vm334 = vcmp.ge.f32.partialorder %v325, 0.1
        %vm335 = vcmp.ge.f32.partialorder %v327, 0.1
        %v336 = vsel %vm328, %v313, 0.0
        %v337 = vsel %vm329, %v315, 0.0
        %v338 = vsel %vm330, %v317, 0.0
        %v339 = vsel %vm331, %v319, 0.0
        %v340 = vsel %vm332, %v321, 0.0
        %v341 = vsel %vm333, %v323, 0.0
        %v342 = vsel %vm334, %v325, 0.0
        %v343 = vsel %vm335, %v327, 0.0
        %344 = vst [vmem:[%s196] sm:$0xff] %v336
        %345 = vst [vmem:[%s196 + $0x8] sm:$0xff] %v337
        %346 = vst [vmem:[%s196 + $0x10] sm:$0xff] %v338
        %347 = vst [vmem:[%s196 + $0x18] sm:$0xff] %v339
        %348 = vst [vmem:[%s196 + $0x20] sm:$0xff] %v340
        %349 = vst [vmem:[%s196 + $0x28] sm:$0xff] %v341
        %350 = vst [vmem:[%s196 + $0x30] sm:$0xff] %v342
        %351 = vst [vmem:[%s196 + $0x38] sm:$0xff] %v343
        %s352 = sand.u32 %s91, 1
        %s353 = scalar_lea.sflag [#allocation4], %s352
        %s354 = sand.u32 %s91, 1
        %s355 = smul.addr %s354, 64
        %s356 = scalar_lea.vmem [#allocation7], %s355
        // Predicated region
        $region37: #{tpu_custom_call.1} parent=27 // pred_check
          %p357 = pneg %p101
        $region38: #{tpu_custom_call.1} parent=27 // pred_check_branch
          %359 = sbr.rel (%p357) target = $region40
        $region39: #{tpu_custom_call.1} parent=27 // pred_region
          %s360 = smul.u32 2, %s25
          %362 = vsyncadd %s353, 0
          %s363 = smul.addr %s24, 8
          %s364 = sadd.s32 %s360, %s363
          %s365 = smul.addr %s364, 8
          %s366 = scalar_lea.hbm %s2, %s365
          %s367 = sshll.u32 %s356, 4
          %s368 = int_to_ptr.vmem [resolvable:$true] %s367
          %s369 = sshll.u32 %s366, 4
          %s370 = int_to_ptr.hbm [resolvable:$true] %s369
          %375 = dma.vmem_to_hbm [thread:$0]  %s368, 1024, %s370, %s353, 256, 256, 16
        $region40: #{tpu_custom_call.1} parent=27 // pred_fallthru
          _
      $region28: #{tpu_custom_call.1} parent=5 // pred_fallthru
        _
      %p376 = scmp.le.s32.totalorder 2, %s15
      // Predicated region
      $region41: #{tpu_custom_call.1} parent=5 // pred_check
        %p377 = pneg %p376
      $region42: #{tpu_custom_call.1} parent=5 // pred_check_branch
        %379 = sbr.rel (%p377) target = $region44
      $region43: #{tpu_custom_call.1} parent=5 // pred_region
        %s380 = ssub.s32 %s15, 2
        // Predicated region
        $region45: #{tpu_custom_call.1} parent=43 // pred_check
          %p381 = pneg %p107
        $region46: #{tpu_custom_call.1} parent=43 // pred_check_branch
          %383 = sbr.rel (%p381) target = $region48
        $region47: #{tpu_custom_call.1} parent=43 // pred_region
          %s384 = sand.u32 %s92, 1
          %s385 = scalar_lea.sflag [#allocation4], %s384
          %s386 = sand.u32 %s92, 1
          %s387 = smul.addr %s386, 64
          %s388 = scalar_lea.vmem [#allocation7], %s387
          %390 = dma.done %s385, 1024
        $region48: #{tpu_custom_call.1} parent=43 // pred_fallthru
          _
      $region44: #{tpu_custom_call.1} parent=5 // pred_fallthru
        _
    $region6: #{tpu_custom_call.1} parent=1 // loop_footer
      %s19 = sadd.s32 1, %s15
    $region7: #{tpu_custom_call.1} parent=1 // loop_footer_branch
      %14 = sbr.rel target = $region3
    $region8: #{tpu_custom_call.1} parent=1 // loop_exit
      _
    %391 = vsyncpa [#allocation3], 1
    %s392 = scalar_lea.sflag [#allocation3], 1
    %393 = vsyncpa %s392, 1
    %394 = vsyncpa [#allocation6], 1
    %395 = vsyncpa [#allocation4], 1
    %s396 = scalar_lea.sflag [#allocation4], 1
    %397 = vsyncpa %s396, 1

</llo_original>
